<compile_context>
chip_gen: v7x
topology: tpu7x:2x2x1
jax: 0.10.0
libtpu: 0.0.40
codegen_flags: <defaults>
</compile_context>

<pallas_src>
import functools

import jax
import jax.numpy as jnp
from jax.experimental import pallas as pl
from jax.experimental.pallas import tpu as pltpu

LANE = 128
MB = 1024 * 1024


def _round_up(v, m):
    return ((v + m - 1) // m) * m


def _pad2d(x, rows, cols, dtype):
    r, c = x.shape
    return jnp.pad(x, ((0, rows - r), (0, cols - c))).astype(dtype)


def _vmem_capacity_bytes():
    try:
        return int(pltpu.get_tpu_info().vmem_capacity_bytes)
    except Exception:
        return 128 * MB  # conservative default (v5e/v6e-class part)


# ---------------------------------------------------------------------------
# Fused single-call kernel: whole SGC forward in one VMEM-resident tile.
# A is read from HBM once and reused for all three propagations.
# ---------------------------------------------------------------------------
def _sgc_fused_kernel(adj_ref, x_ref, w1_ref, b1_ref, w2_ref, b2_ref, o_ref):
    a = adj_ref[...]                                               # [Np,Np] bf16
    # conv1 (k=2), project-first:  h1 = A @ (A @ (x @ W1)) + b1
    z = jnp.dot(x_ref[...], w1_ref[...], preferred_element_type=jnp.float32)
    h = jnp.dot(a, z.astype(jnp.bfloat16), preferred_element_type=jnp.float32)
    h = jnp.dot(a, h.astype(jnp.bfloat16),
                preferred_element_type=jnp.float32) + b1_ref[...]
    # conv2 (k=1):  h2 = (A @ h1) @ W2 + b2
    h = jnp.dot(a, h.astype(jnp.bfloat16), preferred_element_type=jnp.float32)
    o_ref[...] = (jnp.dot(h.astype(jnp.bfloat16), w2_ref[...],
                          preferred_element_type=jnp.float32) + b2_ref[...])


def _sgc_fused(adj, x, w1, b1, w2, b2, vmem_limit):
    np_ = adj.shape[0]
    out_p = w2.shape[1]
    vmem = pl.BlockSpec(memory_space=pltpu.MemorySpace.VMEM)
    return pl.pallas_call(
        _sgc_fused_kernel,
        out_shape=jax.ShapeDtypeStruct((np_, out_p), jnp.float32),
        in_specs=[vmem] * 6,
        out_specs=vmem,
        compiler_params=pltpu.CompilerParams(vmem_limit_bytes=vmem_limit),
    )(adj, x, w1, b1, w2, b2)


# ---------------------------------------------------------------------------
# Tiled kernels for graphs too big for one VMEM tile.
# ---------------------------------------------------------------------------
def _project_kernel(x_ref, w_ref, o_ref):
    # out = X @ W  (row-tiled; bf16 operands, f32 accumulation)
    o_ref[...] = jnp.dot(x_ref[...], w_ref[...],
                         preferred_element_type=jnp.float32).astype(o_ref.dtype)


def _project(x, w, vmem_limit, *, tm=256):
    np_, in_p = x.shape
    out_w = w.shape[1]
    return pl.pallas_call(
        _project_kernel,
        out_shape=jax.ShapeDtypeStruct((np_, out_w), jnp.bfloat16),
        grid_spec=pltpu.PrefetchScalarGridSpec(
            num_scalar_prefetch=0,
            grid=(np_ // tm,),
            in_specs=[
                pl.BlockSpec((tm, in_p), lambda i: (i, 0)),
                pl.BlockSpec((in_p, out_w), lambda i: (0, 0)),
            ],
            out_specs=pl.BlockSpec((tm, out_w), lambda i: (i, 0)),
        ),
        compiler_params=pltpu.CompilerParams(
            dimension_semantics=("parallel",),
            vmem_limit_bytes=vmem_limit),
    )(x, w)


def _propagate_kernel(a_ref, h_ref, b_ref, o_ref, acc_ref):
    # out = A @ H + b    (f32 accumulator, reduction axis last)
    k = pl.program_id(1)

    @pl.when(k == 0)
    def _():
        acc_ref[...] = jnp.zeros_like(acc_ref)

    acc_ref[...] += jnp.dot(a_ref[...], h_ref[...],
                            preferred_element_type=jnp.float32)

    @pl.when(k == pl.num_programs(1) - 1)
    def _():
        o_ref[...] = (acc_ref[...] + b_ref[...]).astype(o_ref.dtype)


def _propagate(adj, h, b, out_dtype, vmem_limit, *, tm=256, tk=512):
    np_ = adj.shape[0]
    f = h.shape[1]
    grid = (np_ // tm, np_ // tk)
    return pl.pallas_call(
        _propagate_kernel,
        out_shape=jax.ShapeDtypeStruct((np_, f), out_dtype),
        grid_spec=pltpu.PrefetchScalarGridSpec(
            num_scalar_prefetch=0,
            grid=grid,
            in_specs=[
                pl.BlockSpec((tm, tk), lambda i, k: (i, k)),   # A tile
                pl.BlockSpec((tk, f), lambda i, k: (k, 0)),    # H tile
                pl.BlockSpec((1, f), lambda i, k: (0, 0)),     # bias row
            ],
            out_specs=pl.BlockSpec((tm, f), lambda i, k: (i, 0)),
            scratch_shapes=[pltpu.VMEM((tm, f), jnp.float32)],
        ),
        compiler_params=pltpu.CompilerParams(
            dimension_semantics=("parallel", "arbitrary"),
            vmem_limit_bytes=vmem_limit),
    )(adj, h, b)


def _prop_proj_kernel(a_ref, h_ref, w_ref, b_ref, o_ref, acc_ref):
    # out = (A @ H) @ W + b   (projection fused into the final reduction step)
    k = pl.program_id(1)

    @pl.when(k == 0)
    def _():
        acc_ref[...] = jnp.zeros_like(acc_ref)

    acc_ref[...] += jnp.dot(a_ref[...], h_ref[...],
                            preferred_element_type=jnp.float32)

    @pl.when(k == pl.num_programs(1) - 1)
    def _():
        y = jnp.dot(acc_ref[...].astype(jnp.bfloat16), w_ref[...],
                    preferred_element_type=jnp.float32) + b_ref[...]
        o_ref[...] = y.astype(o_ref.dtype)


def _prop_proj(adj, h, w, b, out_dtype, vmem_limit, *, tm=256, tk=512):
    np_ = adj.shape[0]
    f_in = h.shape[1]
    f_out = w.shape[1]
    grid = (np_ // tm, np_ // tk)
    return pl.pallas_call(
        _prop_proj_kernel,
        out_shape=jax.ShapeDtypeStruct((np_, f_out), out_dtype),
        grid_spec=pltpu.PrefetchScalarGridSpec(
            num_scalar_prefetch=0,
            grid=grid,
            in_specs=[
                pl.BlockSpec((tm, tk), lambda i, k: (i, k)),     # A tile
                pl.BlockSpec((tk, f_in), lambda i, k: (k, 0)),   # H tile
                pl.BlockSpec((f_in, f_out), lambda i, k: (0, 0)),  # W (whole)
                pl.BlockSpec((1, f_out), lambda i, k: (0, 0)),   # bias row
            ],
            out_specs=pl.BlockSpec((tm, f_out), lambda i, k: (i, 0)),
            scratch_shapes=[pltpu.VMEM((tm, f_in), jnp.float32)],
        ),
        compiler_params=pltpu.CompilerParams(
            dimension_semantics=("parallel", "arbitrary"),
            vmem_limit_bytes=vmem_limit),
    )(adj, h, w, b)


# ---------------------------------------------------------------------------
# SGC forward (matches the PyTorch module's forward).
# ---------------------------------------------------------------------------
def sgc_forward(adj_norm, x, params, *, force_tiled=False):
    n, in_feats = x.shape
    hid = params["w1"].shape[1]
    out_feats = params["w2"].shape[1]

    # Generation-aware VMEM budget (128 MiB v5e/v6e vs 64 MiB v7x).
    cap = _vmem_capacity_bytes()
    if cap >= 96 * MB:
        vmem_limit = 96 * MB       # keep A resident longer on 128 MiB parts
        fused_thresh = 72 * MB
    else:
        vmem_limit = 40 * MB       # v7x: 64 MiB/TC; prefer the tiled (2-TC) path
        fused_thresh = 16 * MB

    # Per-dimension lane padding.
    in_p = _round_up(in_feats, LANE)
    hid_p = _round_up(hid, LANE)
    out_p = _round_up(out_feats, LANE)

    # Fused-path VMEM estimate, including the live f32 intermediates
    # (three Np x width f32 temporaries + their bf16 casts).
    np_small = _round_up(n, LANE)
    wide = max(hid_p, out_p)
    fused_bytes = (2 * np_small * np_small                # A bf16
                   + 2 * np_small * in_p                  # x bf16
                   + 2 * in_p * hid_p + 2 * hid_p * out_p  # weights bf16
                   + 4 * (hid_p + out_p)                  # biases f32
                   + 4 * np_small * out_p                 # output f32
                   + 3 * 6 * np_small * wide)             # f32 temps + bf16 casts
    use_fused = (not force_tiled) and fused_bytes <= fused_thresh

    # Fused path pads N to 128; tiled path pads to 512 so the contraction tile
    # can be 512 (full 256-wide MXU fill, fewer grid steps).
    np_ = np_small if use_fused else _round_up(max(n, 512), 512)

    # bf16 MXU operands (A dominates traffic); biases stay f32, all
    # accumulation / bias adds happen in f32 inside the kernels.
    adj_p = _pad2d(adj_norm, np_, np_, jnp.bfloat16)
    x_p = _pad2d(x, np_, in_p, jnp.bfloat16)
    w1_p = _pad2d(params["w1"], in_p, hid_p, jnp.bfloat16)
    w2_p = _pad2d(params["w2"], hid_p, out_p, jnp.bfloat16)
    b1_p = _pad2d(params["b1"].reshape(1, -1), 1, hid_p, jnp.float32)
    b2_p = _pad2d(params["b2"].reshape(1, -1), 1, out_p, jnp.float32)

    if use_fused:
        out = _sgc_fused(adj_p, x_p, w1_p, b1_p, w2_p, b2_p, vmem_limit)
    else:
        # Project-first tiled path: widths are hid_p (not max/fp) for every
        # propagation, and there is no identity-matmul pass.
        zero_bh = jnp.zeros((1, hid_p), jnp.float32)
        z = _project(x_p, w1_p, vmem_limit)                           # x @ W1
        t = _propagate(adj_p, z, zero_bh, jnp.bfloat16, vmem_limit)   # A @ z
        h1 = _propagate(adj_p, t, b1_p, jnp.bfloat16, vmem_limit)     # A @ t + b1
        out = _prop_proj(adj_p, h1, w2_p, b2_p, jnp.float32, vmem_limit)  # (A@h1)@W2+b2

    return out[:n, :out_feats]


# ---------------------------------------------------------------------------
# Glue (plain JAX): dense symmetric graph with D^{-1/2} A D^{-1/2} norm, params.
# ---------------------------------------------------------------------------
def build_normalized_adj(key, n):
    a = (jax.random.uniform(key, (n, n)) < 0.15).astype(jnp.float32)
    a = jnp.maximum(a, a.T)                                # symmetrize
    a = jnp.maximum(a, jnp.eye(n, dtype=jnp.float32))      # self-loops
    deg = jnp.sum(a, axis=1)
    d_inv_sqrt = 1.0 / jnp.sqrt(deg)
    return a * d_inv_sqrt[:, None] * d_inv_sqrt[None, :]


def init_params(key, in_feats, hid_feats, out_feats):
    k1, k2, k3, k4 = jax.random.split(key, 4)
    s1 = 1.0 / jnp.sqrt(in_feats)
    s2 = 1.0 / jnp.sqrt(hid_feats)
    return {
        "w1": jax.random.uniform(k1, (in_feats, hid_feats), jnp.float32, -s1, s1),
        "b1": jax.random.uniform(k2, (hid_feats,), jnp.float32, -s1, s1),
        "w2": jax.random.uniform(k3, (hid_feats, out_feats), jnp.float32, -s2, s2),
        "b2": jax.random.uniform(k4, (out_feats,), jnp.float32, -s2, s2),
    }


if __name__ == "__main__":
    N, IN_FEATS, HID_FEATS, OUT_FEATS = 64, 16, 32, 8

    key = jax.random.PRNGKey(0)
    k_adj, k_x, k_p = jax.random.split(key, 3)

    adj_norm = build_normalized_adj(k_adj, N)                     # [N, N]
    x = jax.random.normal(k_x, (N, IN_FEATS), dtype=jnp.float32)  # [N, in_feats]
    params = init_params(k_p, IN_FEATS, HID_FEATS, OUT_FEATS)

    fwd_fused = jax.jit(functools.partial(sgc_forward, force_tiled=False))
    fwd_tiled = jax.jit(functools.partial(sgc_forward, force_tiled=True))

    out = fwd_fused(adj_norm, x, params)
    jax.block_until_ready(out)
    out_tiled = fwd_tiled(adj_norm, x, params)     # exercise the scalable path too
    jax.block_until_ready(out_tiled)

    # Plain-JAX f32 reference of the same math.
    h1_ref = (adj_norm @ (adj_norm @ x)) @ params["w1"] + params["b1"]
    h2_ref = (adj_norm @ h1_ref) @ params["w2"] + params["b2"]

    assert out.shape == (N, OUT_FEATS)
    # bf16 operands (f32 accumulation) => relaxed tolerance vs the f32 reference.
    assert jnp.allclose(out, h2_ref, atol=5e-2, rtol=5e-2)
    assert jnp.allclose(out_tiled, h2_ref, atol=5e-2, rtol=5e-2)
    assert jnp.allclose(out, out_tiled, atol=5e-2, rtol=5e-2)

    print("KERNEL_OK")
</pallas_src>

<mosaic_0001>
module attributes {stable_mosaic.version = 11 : i64} {
  func.func @_sgc_fused_kernel(%arg0: memref<128x128xbf16, #tpu.memory_space<vmem>>, %arg1: memref<128x128xbf16, #tpu.memory_space<vmem>>, %arg2: memref<128x128xbf16, #tpu.memory_space<vmem>>, %arg3: memref<1x128xf32, #tpu.memory_space<vmem>>, %arg4: memref<128x128xbf16, #tpu.memory_space<vmem>>, %arg5: memref<1x128xf32, #tpu.memory_space<vmem>>, %arg6: memref<128x128xf32, #tpu.memory_space<vmem>>) attributes {dimension_semantics = [], scalar_prefetch = 0 : i64, scratch_operands = 0 : i64, tpu.core_type = #tpu.core_type<tc>} {
    %c0 = arith.constant 0 : index
    %c0_0 = arith.constant 0 : index
    %0 = vector.load %arg0[%c0, %c0_0] : memref<128x128xbf16, #tpu.memory_space<vmem>>, vector<128x128xbf16>
    %c0_1 = arith.constant 0 : index
    %c0_2 = arith.constant 0 : index
    %1 = vector.load %arg1[%c0_1, %c0_2] : memref<128x128xbf16, #tpu.memory_space<vmem>>, vector<128x128xbf16>
    %c0_3 = arith.constant 0 : index
    %c0_4 = arith.constant 0 : index
    %2 = vector.load %arg2[%c0_3, %c0_4] : memref<128x128xbf16, #tpu.memory_space<vmem>>, vector<128x128xbf16>
    %cst = arith.constant dense<0.000000e+00> : vector<128x128xf32>
    %3 = tpu.matmul %1, %2, %cst {dimension_numbers = #tpu.dot_dimension_numbers<[1], [0], [0], [1], [0, 0, 1, 1], [], []>} : vector<128x128xbf16>, vector<128x128xbf16>, vector<128x128xf32> -> vector<128x128xf32>
    %4 = arith.truncf %3 : vector<128x128xf32> to vector<128x128xbf16>
    %cst_5 = arith.constant dense<0.000000e+00> : vector<128x128xf32>
    %5 = tpu.matmul %0, %4, %cst_5 {dimension_numbers = #tpu.dot_dimension_numbers<[1], [0], [0], [1], [0, 0, 1, 1], [], []>} : vector<128x128xbf16>, vector<128x128xbf16>, vector<128x128xf32> -> vector<128x128xf32>
    %6 = arith.truncf %5 : vector<128x128xf32> to vector<128x128xbf16>
    %cst_6 = arith.constant dense<0.000000e+00> : vector<128x128xf32>
    %7 = tpu.matmul %0, %6, %cst_6 {dimension_numbers = #tpu.dot_dimension_numbers<[1], [0], [0], [1], [0, 0, 1, 1], [], []>} : vector<128x128xbf16>, vector<128x128xbf16>, vector<128x128xf32> -> vector<128x128xf32>
    %c0_7 = arith.constant 0 : index
    %c0_8 = arith.constant 0 : index
    %8 = vector.load %arg3[%c0_7, %c0_8] : memref<1x128xf32, #tpu.memory_space<vmem>>, vector<1x128xf32>
    %9 = vector.broadcast %8 : vector<1x128xf32> to vector<128x128xf32>
    %10 = arith.addf %7, %9 : vector<128x128xf32>
    %11 = arith.truncf %10 : vector<128x128xf32> to vector<128x128xbf16>
    %cst_9 = arith.constant dense<0.000000e+00> : vector<128x128xf32>
    %12 = tpu.matmul %0, %11, %cst_9 {dimension_numbers = #tpu.dot_dimension_numbers<[1], [0], [0], [1], [0, 0, 1, 1], [], []>} : vector<128x128xbf16>, vector<128x128xbf16>, vector<128x128xf32> -> vector<128x128xf32>
    %13 = arith.truncf %12 : vector<128x128xf32> to vector<128x128xbf16>
    %c0_10 = arith.constant 0 : index
    %c0_11 = arith.constant 0 : index
    %14 = vector.load %arg4[%c0_10, %c0_11] : memref<128x128xbf16, #tpu.memory_space<vmem>>, vector<128x128xbf16>
    %cst_12 = arith.constant dense<0.000000e+00> : vector<128x128xf32>
    %15 = tpu.matmul %13, %14, %cst_12 {dimension_numbers = #tpu.dot_dimension_numbers<[1], [0], [0], [1], [0, 0, 1, 1], [], []>} : vector<128x128xbf16>, vector<128x128xbf16>, vector<128x128xf32> -> vector<128x128xf32>
    %c0_13 = arith.constant 0 : index
    %c0_14 = arith.constant 0 : index
    %16 = vector.load %arg5[%c0_13, %c0_14] : memref<1x128xf32, #tpu.memory_space<vmem>>, vector<1x128xf32>
    %17 = vector.broadcast %16 : vector<1x128xf32> to vector<128x128xf32>
    %18 = arith.addf %15, %17 : vector<128x128xf32>
    %c0_15 = arith.constant 0 : index
    %c0_16 = arith.constant 0 : index
    %19 = vector.load %arg6[%c0_15, %c0_16] : memref<128x128xf32, #tpu.memory_space<vmem>>, vector<128x128xf32>
    tpu.vector_store %arg6[%c0_15, %c0_16], %18 {strides = array<i32>} : memref<128x128xf32, #tpu.memory_space<vmem>>, vector<128x128xf32>,
    return
  }
}

</mosaic_0001>

<llo_original>
// kernel: sgc_forward.1
$region0: #{sgc_forward.1}
  #allocation0 [shape = 'u32[]', space=smem, size = 0x4, offset = 0x4, fixed_abs, tag = 'smem constant byte address 0x4 - core index']
  #allocation1 [shape = 'u32[144,128]{1,0:T(1,128)}', space=vmem, size = 0x12000, scoped, tag = 'internal scratch']
  %s0 = inlined_call_operand.hbm [shape: bf16[128,128], index: 0, kind: input, shape index: {}]
  %s1 = inlined_call_operand.hbm [shape: bf16[128,128], index: 1, kind: input, shape index: {}]
  %s2 = inlined_call_operand.hbm [shape: bf16[128,128], index: 2, kind: input, shape index: {}]
  %s3 = inlined_call_operand.hbm [shape: f32[1,128], index: 3, kind: input, shape index: {}]
  %s4 = inlined_call_operand.hbm [shape: bf16[128,128], index: 4, kind: input, shape index: {}]
  %s5 = inlined_call_operand.hbm [shape: f32[1,128], index: 5, kind: input, shape index: {}]
  %s6 = inlined_call_operand.hbm [shape: f32[128,128], index: 6, kind: output, shape index: {}]
  %s7 = sld [smem:[#allocation0]]
  $region58: #{sgc_forward.1} parent=0
    _
  %s9 = ssub.s32 1, %s7
  %s10 = scalar_select 0, %s9, %s7
  $region1: #{sgc_forward.1} parent=0
    #allocation2 [shape = 'u8[32768]{0}', space=vmem, size = 0x8000, scoped, tag = 'input window, operand 0, single buffered']
    #allocation3 [shape = 's32[1]{0}', space=sflag, size = 0x4, scoped, tag = 'scoped memory for sgc_forward.1']
    #allocation4 [shape = 's32[1]{0}', space=sflag, size = 0x4, scoped, tag = 'scoped memory for sgc_forward.1']
    #allocation5 [shape = 'u8[32768]{0}', space=vmem, size = 0x8000, scoped, tag = 'input window, operand 1, single buffered']
    #allocation6 [shape = 's32[1]{0}', space=sflag, size = 0x4, scoped, tag = 'scoped memory for sgc_forward.1']
    #allocation7 [shape = 'u8[32768]{0}', space=vmem, size = 0x8000, scoped, tag = 'input window, operand 2, single buffered']
    #allocation8 [shape = 'u8[512]{0}', space=vmem, size = 0x400, scoped, tag = 'input window, operand 3, single buffered']
    #allocation9 [shape = 's32[1]{0}', space=sflag, size = 0x4, scoped, tag = 'scoped memory for sgc_forward.1']
    #allocation10 [shape = 'u8[32768]{0}', space=vmem, size = 0x8000, scoped, tag = 'input window, operand 4, single buffered']
    #allocation11 [shape = 'u8[512]{0}', space=vmem, size = 0x400, scoped, tag = 'input window, operand 5, single buffered']
    #allocation12 [shape = 's32[1]{0}', space=sflag, size = 0x4, scoped, tag = 'scoped memory for sgc_forward.1']
    #allocation13 [shape = 'u8[65536]{0}', space=vmem, size = 0x10000, scoped, tag = 'output window, operand 0, single buffered']
    %11 = vsyncpa [#allocation3], 0
    %12 = vsyncpa [#allocation6], 0
    %13 = vsyncpa [#allocation9], 0
    %14 = vsyncpa [#allocation12], 0
    %15 = vsyncpa [#allocation4], 0
    // Predicated region
    $region2: #{sgc_forward.1} parent=1 // pred_check
      _
    $region3: #{sgc_forward.1} parent=1 // pred_check_branch
      %17 = sbr.rel (0) target = $region5
    $region4: #{sgc_forward.1} parent=1 // pred_region
      %s19 = ssub.s32 1024, 1024
      %20 = vsyncadd [#allocation3], %s19
      %s21 = sshll.u32 [#allocation2], 4
      %s22 = int_to_ptr.vmem [resolvable:$true] %s21
      %27 = dma.hbm_to_vmem [thread:$0]  %s0, 1024, %s22, [#allocation3], 64, 64, 4
    $region5: #{sgc_forward.1} parent=1 // pred_fallthru
      _
    // Predicated region
    $region6: #{sgc_forward.1} parent=1 // pred_check
      _
    $region7: #{sgc_forward.1} parent=1 // pred_check_branch
      %29 = sbr.rel (0) target = $region9
    $region8: #{sgc_forward.1} parent=1 // pred_region
      %s31 = ssub.s32 1024, 1024
      %32 = vsyncadd [#allocation6], %s31
      %s33 = sshll.u32 [#allocation5], 4
      %s34 = int_to_ptr.vmem [resolvable:$true] %s33
      %39 = dma.hbm_to_vmem [thread:$0]  %s1, 1024, %s34, [#allocation6], 64, 64, 4
    $region9: #{sgc_forward.1} parent=1 // pred_fallthru
      _
    // Predicated region
    $region10: #{sgc_forward.1} parent=1 // pred_check
      _
    $region11: #{sgc_forward.1} parent=1 // pred_check_branch
      %41 = sbr.rel (0) target = $region13
    $region12: #{sgc_forward.1} parent=1 // pred_region
      %s43 = ssub.s32 1024, 1024
      %44 = vsyncadd [#allocation6], %s43
      %s45 = sshll.u32 [#allocation7], 4
      %s46 = int_to_ptr.vmem [resolvable:$true] %s45
      %51 = dma.hbm_to_vmem [thread:$0]  %s2, 1024, %s46, [#allocation6], 64, 64, 4
    $region13: #{sgc_forward.1} parent=1 // pred_fallthru
      _
    // Predicated region
    $region14: #{sgc_forward.1} parent=1 // pred_check
      _
    $region15: #{sgc_forward.1} parent=1 // pred_check_branch
      %53 = sbr.rel (0) target = $region17
    $region16: #{sgc_forward.1} parent=1 // pred_region
      %s55 = ssub.s32 16, 16
      %56 = vsyncadd [#allocation9], %s55
      %s58 = sshll.u32 [#allocation8], 4
      %s59 = int_to_ptr.vmem [resolvable:$true] %s58
      %61 = dma.hbm_to_vmem [thread:$0]  %s3, 16, %s59, [#allocation9]
    $region17: #{sgc_forward.1} parent=1 // pred_fallthru
      _
    // Predicated region
    $region18: #{sgc_forward.1} parent=1 // pred_check
      _
    $region19: #{sgc_forward.1} parent=1 // pred_check_branch
      %63 = sbr.rel (0) target = $region21
    $region20: #{sgc_forward.1} parent=1 // pred_region
      %s65 = ssub.s32 1024, 1024
      %66 = vsyncadd [#allocation9], %s65
      %s67 = sshll.u32 [#allocation10], 4
      %s68 = int_to_ptr.vmem [resolvable:$true] %s67
      %73 = dma.hbm_to_vmem [thread:$0]  %s4, 1024, %s68, [#allocation9], 64, 64, 4
    $region21: #{sgc_forward.1} parent=1 // pred_fallthru
      _
    // Predicated region
    $region22: #{sgc_forward.1} parent=1 // pred_check
      _
    $region23: #{sgc_forward.1} parent=1 // pred_check_branch
      %75 = sbr.rel (0) target = $region25
    $region24: #{sgc_forward.1} parent=1 // pred_region
      %s77 = ssub.s32 16, 16
      %78 = vsyncadd [#allocation12], %s77
      %s80 = sshll.u32 [#allocation11], 4
      %s81 = int_to_ptr.vmem [resolvable:$true] %s80
      %83 = dma.hbm_to_vmem [thread:$0]  %s5, 16, %s81, [#allocation12]
    $region25: #{sgc_forward.1} parent=1 // pred_fallthru
      _
    // Predicated region
    $region26: #{sgc_forward.1} parent=1 // pred_check
      _
    $region27: #{sgc_forward.1} parent=1 // pred_check_branch
      %85 = sbr.rel (0) target = $region29
    $region28: #{sgc_forward.1} parent=1 // pred_region
      %86 = dma.done [#allocation3], 1024
    $region29: #{sgc_forward.1} parent=1 // pred_fallthru
      _
    // Predicated region
    $region30: #{sgc_forward.1} parent=1 // pred_check
      _
    $region31: #{sgc_forward.1} parent=1 // pred_check_branch
      %88 = sbr.rel (0) target = $region33
    $region32: #{sgc_forward.1} parent=1 // pred_region
      %89 = dma.done [#allocation6], 1024
    $region33: #{sgc_forward.1} parent=1 // pred_fallthru
      _
    // Predicated region
    $region34: #{sgc_forward.1} parent=1 // pred_check
      _
    $region35: #{sgc_forward.1} parent=1 // pred_check_branch
      %91 = sbr.rel (0) target = $region37
    $region36: #{sgc_forward.1} parent=1 // pred_region
      %92 = dma.done [#allocation6], 1024
    $region37: #{sgc_forward.1} parent=1 // pred_fallthru
      _
    // Predicated region
    $region38: #{sgc_forward.1} parent=1 // pred_check
      _
    $region39: #{sgc_forward.1} parent=1 // pred_check_branch
      %94 = sbr.rel (0) target = $region41
    $region40: #{sgc_forward.1} parent=1 // pred_region
      %95 = dma.done [#allocation9], 16
    $region41: #{sgc_forward.1} parent=1 // pred_fallthru
      _
    // Predicated region
    $region42: #{sgc_forward.1} parent=1 // pred_check
      _
    $region43: #{sgc_forward.1} parent=1 // pred_check_branch
      %97 = sbr.rel (0) target = $region45
    $region44: #{sgc_forward.1} parent=1 // pred_region
      %98 = dma.done [#allocation9], 1024
    $region45: #{sgc_forward.1} parent=1 // pred_fallthru
      _
    // Predicated region
    $region46: #{sgc_forward.1} parent=1 // pred_check
      _
    $region47: #{sgc_forward.1} parent=1 // pred_check_branch
      %100 = sbr.rel (0) target = $region49
    $region48: #{sgc_forward.1} parent=1 // pred_region
      %101 = dma.done [#allocation12], 16
    $region49: #{sgc_forward.1} parent=1 // pred_fallthru
      _
    %v103 = vld [vmem:[#allocation2] sm:$0xf]
    %v104 = vld [vmem:[#allocation2 + $0x4] sm:$0xf]
    %v105 = vld [vmem:[#allocation2 + $0x8] sm:$0xf]
    %v106 = vld [vmem:[#allocation2 + $0xc] sm:$0xf]
    %v107 = vld [vmem:[#allocation2 + $0x10] sm:$0xf]
    %v108 = vld [vmem:[#allocation2 + $0x14] sm:$0xf]
    %v109 = vld [vmem:[#allocation2 + $0x18] sm:$0xf]
    %v110 = vld [vmem:[#allocation2 + $0x1c] sm:$0xf]
    %v111 = vld [vmem:[#allocation2 + $0x20] sm:$0xf]
    %v112 = vld [vmem:[#allocation2 + $0x24] sm:$0xf]
    %v113 = vld [vmem:[#allocation2 + $0x28] sm:$0xf]
    %v114 = vld [vmem:[#allocation2 + $0x2c] sm:$0xf]
    %v115 = vld [vmem:[#allocation2 + $0x30] sm:$0xf]
    %v116 = vld [vmem:[#allocation2 + $0x34] sm:$0xf]
    %v117 = vld [vmem:[#allocation2 + $0x38] sm:$0xf]
    %v118 = vld [vmem:[#allocation2 + $0x3c] sm:$0xf]
    %v119 = vld [vmem:[#allocation5] sm:$0xf]
    %v120 = vld [vmem:[#allocation5 + $0x4] sm:$0xf]
    %v121 = vld [vmem:[#allocation5 + $0x8] sm:$0xf]
    %v122 = vld [vmem:[#allocation5 + $0xc] sm:$0xf]
    %v123 = vld [vmem:[#allocation5 + $0x10] sm:$0xf]
    %v124 = vld [vmem:[#allocation5 + $0x14] sm:$0xf]
    %v125 = vld [vmem:[#allocation5 + $0x18] sm:$0xf]
    %v126 = vld [vmem:[#allocation5 + $0x1c] sm:$0xf]
    %v127 = vld [vmem:[#allocation5 + $0x20] sm:$0xf]
    %v128 = vld [vmem:[#allocation5 + $0x24] sm:$0xf]
    %v129 = vld [vmem:[#allocation5 + $0x28] sm:$0xf]
    %v130 = vld [vmem:[#allocation5 + $0x2c] sm:$0xf]
    %v131 = vld [vmem:[#allocation5 + $0x30] sm:$0xf]
    %v132 = vld [vmem:[#allocation5 + $0x34] sm:$0xf]
    %v133 = vld [vmem:[#allocation5 + $0x38] sm:$0xf]
    %v134 = vld [vmem:[#allocation5 + $0x3c] sm:$0xf]
    %v135 = vld [vmem:[#allocation7] sm:$0xf]
    %v136 = vld [vmem:[#allocation7 + $0x4] sm:$0xf]
    %v137 = vld [vmem:[#allocation7 + $0x8] sm:$0xf]
    %v138 = vld [vmem:[#allocation7 + $0xc] sm:$0xf]
    %v139 = vld [vmem:[#allocation7 + $0x10] sm:$0xf]
    %v140 = vld [vmem:[#allocation7 + $0x14] sm:$0xf]
    %v141 = vld [vmem:[#allocation7 + $0x18] sm:$0xf]
    %v142 = vld [vmem:[#allocation7 + $0x1c] sm:$0xf]
    %v143 = vld [vmem:[#allocation7 + $0x20] sm:$0xf]
    %v144 = vld [vmem:[#allocation7 + $0x24] sm:$0xf]
    %v145 = vld [vmem:[#allocation7 + $0x28] sm:$0xf]
    %v146 = vld [vmem:[#allocation7 + $0x2c] sm:$0xf]
    %v147 = vld [vmem:[#allocation7 + $0x30] sm:$0xf]
    %v148 = vld [vmem:[#allocation7 + $0x34] sm:$0xf]
    %v149 = vld [vmem:[#allocation7 + $0x38] sm:$0xf]
    %v150 = vld [vmem:[#allocation7 + $0x3c] sm:$0xf]
    %v167 = vunpack.c.l.b16 %v119
    %v168 = vunpack.c.l.b16 %v120
    %v169 = vunpack.c.l.b16 %v121
    %v170 = vunpack.c.l.b16 %v122
    %v171 = vunpack.c.l.b16 %v123
    %v172 = vunpack.c.l.b16 %v124
    %v173 = vunpack.c.l.b16 %v125
    %v174 = vunpack.c.l.b16 %v126
    %v175 = vunpack.c.l.b16 %v127
    %v176 = vunpack.c.l.b16 %v128
    %v177 = vunpack.c.l.b16 %v129
    %v178 = vunpack.c.l.b16 %v130
    %v179 = vunpack.c.l.b16 %v131
    %v180 = vunpack.c.l.b16 %v132
    %v181 = vunpack.c.l.b16 %v133
    %v182 = vunpack.c.l.b16 %v134
    %v183 = vpack.c.b16 %v168, %v167
    %v184 = vpack.c.b16 %v170, %v169
    %v185 = vpack.c.b16 %v172, %v171
    %v186 = vpack.c.b16 %v174, %v173
    %v187 = vpack.c.b16 %v176, %v175
    %v188 = vpack.c.b16 %v178, %v177
    %v189 = vpack.c.b16 %v180, %v179
    %v190 = vpack.c.b16 %v182, %v181
    %v215 = vunpack.c.l.b16 %v135
    %v216 = vunpack.c.l.b16 %v136
    %v217 = vunpack.c.l.b16 %v137
    %v218 = vunpack.c.l.b16 %v138
    %v219 = vunpack.c.l.b16 %v139
    %v220 = vunpack.c.l.b16 %v140
    %v221 = vunpack.c.l.b16 %v141
    %v222 = vunpack.c.l.b16 %v142
    %v223 = vunpack.c.l.b16 %v143
    %v224 = vunpack.c.l.b16 %v144
    %v225 = vunpack.c.l.b16 %v145
    %v226 = vunpack.c.l.b16 %v146
    %v227 = vunpack.c.l.b16 %v147
    %v228 = vunpack.c.l.b16 %v148
    %v229 = vunpack.c.l.b16 %v149
    %v230 = vunpack.c.l.b16 %v150
    %v231 = vpack.c.b16 %v216, %v215
    %v232 = vpack.c.b16 %v218, %v217
    %v233 = vpack.c.b16 %v220, %v219
    %v234 = vpack.c.b16 %v222, %v221
    %v235 = vpack.c.b16 %v224, %v223
    %v236 = vpack.c.b16 %v226, %v225
    %v237 = vpack.c.b16 %v228, %v227
    %v238 = vpack.c.b16 %v230, %v229
    %247 = vmatprep.subr.bf16.mxu0 0
    %248 = vmatpush1.bf16.msra.mxu0 %v231
    %249 = vmatprep.subr.bf16.mxu0 0
    %250 = vmatpush1.bf16.msra.mxu0 %v232
    %251 = vmatprep.subr.bf16.mxu0 0
    %252 = vmatpush1.bf16.msra.mxu0 %v233
    %253 = vmatprep.subr.bf16.mxu0 0
    %254 = vmatpush1.bf16.msra.mxu0 %v234
    %255 = vmatprep.subr.bf16.mxu0 0
    %256 = vmatpush1.bf16.msra.mxu0 %v235
    %257 = vmatprep.subr.bf16.mxu0 0
    %258 = vmatpush1.bf16.msra.mxu0 %v236
    %259 = vmatprep.subr.bf16.mxu0 0
    %260 = vmatpush1.bf16.msra.mxu0 %v237
    %261 = vmatprep.subr.bf16.mxu0 0
    %262 = vmatpush1.bf16.msra.mxu0 %v238
    %263 = vmatprep.subr.bf16.mxu0 0
    %264 = vmatpush1.bf16.msra.mxu0 0
    %265 = vmatprep.subr.bf16.mxu0 0
    %266 = vmatpush1.bf16.msra.mxu0 0
    %267 = vmatprep.subr.bf16.mxu0 0
    %268 = vmatpush1.bf16.msra.mxu0 0
    %269 = vmatprep.subr.bf16.mxu0 0
    %270 = vmatpush1.bf16.msra.mxu0 0
    %271 = vmatprep.subr.bf16.mxu0 0
    %272 = vmatpush1.bf16.msra.mxu0 0
    %273 = vmatprep.subr.bf16.mxu0 0
    %274 = vmatpush1.bf16.msra.mxu0 0
    %275 = vmatprep.subr.bf16.mxu0 0
    %276 = vmatpush1.bf16.msra.mxu0 0
    %277 = vmatprep.subr.bf16.mxu0 0
    %278 = vmatpush1.bf16.msra.mxu0 0
    %279 = vmatprep.mubr.bf16.mxu0 0
    %280 = vmatmul.mubr.bf16.gmra.mrb[0].mxu0 %v183
    %v281 = vpop.f32.mrb[0].mxu0
    %v282 = vadd.f32 0.0, %v281
    %v283 = vpop.f32.mrb[0].mxu0
    %v284 = vpop.f32.mrb[0].mxu0
    %v285 = vadd.f32 0.0, %v284
    %v286 = vpop.f32.mrb[0].mxu0
    %287 = vmatprep.mubr.bf16.mxu0 0
    %288 = vmatmul.mubr.bf16.gmra.mrb[0].mxu0 %v184
    %v289 = vpop.f32.mrb[0].mxu0
    %v290 = vadd.f32 0.0, %v289
    %v291 = vpop.f32.mrb[0].mxu0
    %v292 = vpop.f32.mrb[0].mxu0
    %v293 = vadd.f32 0.0, %v292
    %v294 = vpop.f32.mrb[0].mxu0
    %295 = vmatprep.mubr.bf16.mxu0 0
    %296 = vmatmul.mubr.bf16.gmra.mrb[0].mxu0 %v185
    %v297 = vpop.f32.mrb[0].mxu0
    %v298 = vadd.f32 0.0, %v297
    %v299 = vpop.f32.mrb[0].mxu0
    %v300 = vpop.f32.mrb[0].mxu0
    %v301 = vadd.f32 0.0, %v300
    %v302 = vpop.f32.mrb[0].mxu0
    %303 = vmatprep.mubr.bf16.mxu0 0
    %304 = vmatmul.mubr.bf16.gmra.mrb[0].mxu0 %v186
    %v305 = vpop.f32.mrb[0].mxu0
    %v306 = vadd.f32 0.0, %v305
    %v307 = vpop.f32.mrb[0].mxu0
    %v308 = vpop.f32.mrb[0].mxu0
    %v309 = vadd.f32 0.0, %v308
    %v310 = vpop.f32.mrb[0].mxu0
    %311 = vmatprep.mubr.bf16.mxu0 0
    %312 = vmatmul.mubr.bf16.gmra.mrb[0].mxu0 %v187
    %v313 = vpop.f32.mrb[0].mxu0
    %v314 = vadd.f32 0.0, %v313
    %v315 = vpop.f32.mrb[0].mxu0
    %v316 = vpop.f32.mrb[0].mxu0
    %v317 = vadd.f32 0.0, %v316
    %v318 = vpop.f32.mrb[0].mxu0
    %319 = vmatprep.mubr.bf16.mxu0 0
    %320 = vmatmul.mubr.bf16.gmra.mrb[0].mxu0 %v188
    %v321 = vpop.f32.mrb[0].mxu0
    %v322 = vadd.f32 0.0, %v321
    %v323 = vpop.f32.mrb[0].mxu0
    %v324 = vpop.f32.mrb[0].mxu0
    %v325 = vadd.f32 0.0, %v324
    %v326 = vpop.f32.mrb[0].mxu0
    %327 = vmatprep.mubr.bf16.mxu0 0
    %328 = vmatmul.mubr.bf16.gmra.mrb[0].mxu0 %v189
    %v329 = vpop.f32.mrb[0].mxu0
    %v330 = vadd.f32 0.0, %v329
    %v331 = vpop.f32.mrb[0].mxu0
    %v332 = vpop.f32.mrb[0].mxu0
    %v333 = vadd.f32 0.0, %v332
    %v334 = vpop.f32.mrb[0].mxu0
    %335 = vmatprep.mubr.bf16.mxu0 0
    %336 = vmatmul.mubr.bf16.gmra.mrb[0].mxu0 %v190
    %v337 = vpop.f32.mrb[0].mxu0
    %v338 = vadd.f32 0.0, %v337
    %v339 = vpop.f32.mrb[0].mxu0
    %v340 = vpop.f32.mrb[0].mxu0
    %v341 = vadd.f32 0.0, %v340
    %v342 = vpop.f32.mrb[0].mxu0
    %343 = vdwg.mxu0
    %v344 = vpack.c.bf16 %v285, %v282
    %v345 = vpack.c.bf16 %v293, %v290
    %v346 = vpack.c.bf16 %v301, %v298
    %v347 = vpack.c.bf16 %v309, %v306
    %v348 = vpack.c.bf16 %v317, %v314
    %v349 = vpack.c.bf16 %v325, %v322
    %v350 = vpack.c.bf16 %v333, %v330
    %v351 = vpack.c.bf16 %v341, %v338
    %v368 = vunpack.c.l.b16 %v103
    %v369 = vunpack.c.l.b16 %v104
    %v370 = vunpack.c.l.b16 %v105
    %v371 = vunpack.c.l.b16 %v106
    %v372 = vunpack.c.l.b16 %v107
    %v373 = vunpack.c.l.b16 %v108
    %v374 = vunpack.c.l.b16 %v109
    %v375 = vunpack.c.l.b16 %v110
    %v376 = vunpack.c.l.b16 %v111
    %v377 = vunpack.c.l.b16 %v112
    %v378 = vunpack.c.l.b16 %v113
    %v379 = vunpack.c.l.b16 %v114
    %v380 = vunpack.c.l.b16 %v115
    %v381 = vunpack.c.l.b16 %v116
    %v382 = vunpack.c.l.b16 %v117
    %v383 = vunpack.c.l.b16 %v118
    %v384 = vpack.c.b16 %v369, %v368
    %v385 = vpack.c.b16 %v371, %v370
    %v386 = vpack.c.b16 %v373, %v372
    %v387 = vpack.c.b16 %v375, %v374
    %v388 = vpack.c.b16 %v377, %v376
    %v389 = vpack.c.b16 %v379, %v378
    %v390 = vpack.c.b16 %v381, %v380
    %v391 = vpack.c.b16 %v383, %v382
    %400 = vmatprep.subr.bf16.mxu0 0
    %401 = vmatpush1.bf16.msra.mxu0 %v344
    %402 = vmatprep.subr.bf16.mxu0 0
    %403 = vmatpush1.bf16.msra.mxu0 %v345
    %404 = vmatprep.subr.bf16.mxu0 0
    %405 = vmatpush1.bf16.msra.mxu0 %v346
    %406 = vmatprep.subr.bf16.mxu0 0
    %407 = vmatpush1.bf16.msra.mxu0 %v347
    %408 = vmatprep.subr.bf16.mxu0 0
    %409 = vmatpush1.bf16.msra.mxu0 %v348
    %410 = vmatprep.subr.bf16.mxu0 0
    %411 = vmatpush1.bf16.msra.mxu0 %v349
    %412 = vmatprep.subr.bf16.mxu0 0
    %413 = vmatpush1.bf16.msra.mxu0 %v350
    %414 = vmatprep.subr.bf16.mxu0 0
    %415 = vmatpush1.bf16.msra.mxu0 %v351
    %416 = vmatprep.subr.bf16.mxu0 0
    %417 = vmatpush1.bf16.msra.mxu0 0
    %418 = vmatprep.subr.bf16.mxu0 0
    %419 = vmatpush1.bf16.msra.mxu0 0
    %420 = vmatprep.subr.bf16.mxu0 0
    %421 = vmatpush1.bf16.msra.mxu0 0
    %422 = vmatprep.subr.bf16.mxu0 0
    %423 = vmatpush1.bf16.msra.mxu0 0
    %424 = vmatprep.subr.bf16.mxu0 0
    %425 = vmatpush1.bf16.msra.mxu0 0
    %426 = vmatprep.subr.bf16.mxu0 0
    %427 = vmatpush1.bf16.msra.mxu0 0
    %428 = vmatprep.subr.bf16.mxu0 0
    %429 = vmatpush1.bf16.msra.mxu0 0
    %430 = vmatprep.subr.bf16.mxu0 0
    %431 = vmatpush1.bf16.msra.mxu0 0
    %432 = vmatprep.mubr.bf16.mxu0 0
    %433 = vmatmul.mubr.bf16.gmra.mrb[0].mxu0 %v384
    %v434 = vpop.f32.mrb[0].mxu0
    %v435 = vadd.f32 0.0, %v434
    %v436 = vpop.f32.mrb[0].mxu0
    %v437 = vpop.f32.mrb[0].mxu0
    %v438 = vadd.f32 0.0, %v437
    %v439 = vpop.f32.mrb[0].mxu0
    %440 = vmatprep.mubr.bf16.mxu0 0
    %441 = vmatmul.mubr.bf16.gmra.mrb[0].mxu0 %v385
    %v442 = vpop.f32.mrb[0].mxu0
    %v443 = vadd.f32 0.0, %v442
    %v444 = vpop.f32.mrb[0].mxu0
    %v445 = vpop.f32.mrb[0].mxu0
    %v446 = vadd.f32 0.0, %v445
    %v447 = vpop.f32.mrb[0].mxu0
    %448 = vmatprep.mubr.bf16.mxu0 0
    %449 = vmatmul.mubr.bf16.gmra.mrb[0].mxu0 %v386
    %v450 = vpop.f32.mrb[0].mxu0
    %v451 = vadd.f32 0.0, %v450
    %v452 = vpop.f32.mrb[0].mxu0
    %v453 = vpop.f32.mrb[0].mxu0
    %v454 = vadd.f32 0.0, %v453
    %v455 = vpop.f32.mrb[0].mxu0
    %456 = vmatprep.mubr.bf16.mxu0 0
    %457 = vmatmul.mubr.bf16.gmra.mrb[0].mxu0 %v387
    %v458 = vpop.f32.mrb[0].mxu0
    %v459 = vadd.f32 0.0, %v458
    %v460 = vpop.f32.mrb[0].mxu0
    %v461 = vpop.f32.mrb[0].mxu0
    %v462 = vadd.f32 0.0, %v461
    %v463 = vpop.f32.mrb[0].mxu0
    %464 = vmatprep.mubr.bf16.mxu0 0
    %465 = vmatmul.mubr.bf16.gmra.mrb[0].mxu0 %v388
    %v466 = vpop.f32.mrb[0].mxu0
    %v467 = vadd.f32 0.0, %v466
    %v468 = vpop.f32.mrb[0].mxu0
    %v469 = vpop.f32.mrb[0].mxu0
    %v470 = vadd.f32 0.0, %v469
    %v471 = vpop.f32.mrb[0].mxu0
    %472 = vmatprep.mubr.bf16.mxu0 0
    %473 = vmatmul.mubr.bf16.gmra.mrb[0].mxu0 %v389
    %v474 = vpop.f32.mrb[0].mxu0
    %v475 = vadd.f32 0.0, %v474
    %v476 = vpop.f32.mrb[0].mxu0
    %v477 = vpop.f32.mrb[0].mxu0
    %v478 = vadd.f32 0.0, %v477
    %v479 = vpop.f32.mrb[0].mxu0
    %480 = vmatprep.mubr.bf16.mxu0 0
    %481 = vmatmul.mubr.bf16.gmra.mrb[0].mxu0 %v390
    %v482 = vpop.f32.mrb[0].mxu0
    %v483 = vadd.f32 0.0, %v482
    %v484 = vpop.f32.mrb[0].mxu0
    %v485 = vpop.f32.mrb[0].mxu0
    %v486 = vadd.f32 0.0, %v485
    %v487 = vpop.f32.mrb[0].mxu0
    %488 = vmatprep.mubr.bf16.mxu0 0
    %489 = vmatmul.mubr.bf16.gmra.mrb[0].mxu0 %v391
    %v490 = vpop.f32.mrb[0].mxu0
    %v491 = vadd.f32 0.0, %v490
    %v492 = vpop.f32.mrb[0].mxu0
    %v493 = vpop.f32.mrb[0].mxu0
    %v494 = vadd.f32 0.0, %v493
    %v495 = vpop.f32.mrb[0].mxu0
    %496 = vdwg.mxu0
    %v497 = vpack.c.bf16 %v438, %v435
    %v498 = vpack.c.bf16 %v446, %v443
    %v499 = vpack.c.bf16 %v454, %v451
    %v500 = vpack.c.bf16 %v462, %v459
    %v501 = vpack.c.bf16 %v470, %v467
    %v502 = vpack.c.bf16 %v478, %v475
    %v503 = vpack.c.bf16 %v486, %v483
    %v504 = vpack.c.bf16 %v494, %v491
    %v505 = vld [vmem:[#allocation8] sm:$0x1]
    %v507 = vlaneseq
    %v508 = vshrl.u32 %v507, 7
    %v509 = vsub.s32 0, %v508
    %v510 = vrot.slane %v505, %v509
    %512 = vmatprep.subr.bf16.mxu0 0
    %513 = vmatpush1.bf16.msra.mxu0 %v497
    %514 = vmatprep.subr.bf16.mxu0 0
    %515 = vmatpush1.bf16.msra.mxu0 %v498
    %516 = vmatprep.subr.bf16.mxu0 0
    %517 = vmatpush1.bf16.msra.mxu0 %v499
    %518 = vmatprep.subr.bf16.mxu0 0
    %519 = vmatpush1.bf16.msra.mxu0 %v500
    %520 = vmatprep.subr.bf16.mxu0 0
    %521 = vmatpush1.bf16.msra.mxu0 %v501
    %522 = vmatprep.subr.bf16.mxu0 0
    %523 = vmatpush1.bf16.msra.mxu0 %v502
    %524 = vmatprep.subr.bf16.mxu0 0
    %525 = vmatpush1.bf16.msra.mxu0 %v503
    %526 = vmatprep.subr.bf16.mxu0 0
    %527 = vmatpush1.bf16.msra.mxu0 %v504
    %528 = vmatprep.subr.bf16.mxu0 0
    %529 = vmatpush1.bf16.msra.mxu0 0
    %530 = vmatprep.subr.bf16.mxu0 0
    %531 = vmatpush1.bf16.msra.mxu0 0
    %532 = vmatprep.subr.bf16.mxu0 0
    %533 = vmatpush1.bf16.msra.mxu0 0
    %534 = vmatprep.subr.bf16.mxu0 0
    %535 = vmatpush1.bf16.msra.mxu0 0
    %536 = vmatprep.subr.bf16.mxu0 0
    %537 = vmatpush1.bf16.msra.mxu0 0
    %538 = vmatprep.subr.bf16.mxu0 0
    %539 = vmatpush1.bf16.msra.mxu0 0
    %540 = vmatprep.subr.bf16.mxu0 0
    %541 = vmatpush1.bf16.msra.mxu0 0
    %542 = vmatprep.subr.bf16.mxu0 0
    %543 = vmatpush1.bf16.msra.mxu0 0
    %544 = vmatprep.mubr.bf16.mxu0 0
    %545 = vmatmul.mubr.bf16.gmra.mrb[0].mxu0 %v384
    %v546 = vpop.f32.mrb[0].mxu0
    %v547 = vadd.f32 %v510, %v546
    %v548 = vpop.f32.mrb[0].mxu0
    %v549 = vpop.f32.mrb[0].mxu0
    %v550 = vadd.f32 %v510, %v549
    %v551 = vpop.f32.mrb[0].mxu0
    %552 = vmatprep.mubr.bf16.mxu0 0
    %553 = vmatmul.mubr.bf16.gmra.mrb[0].mxu0 %v385
    %v554 = vpop.f32.mrb[0].mxu0
    %v555 = vadd.f32 %v510, %v554
    %v556 = vpop.f32.mrb[0].mxu0
    %v557 = vpop.f32.mrb[0].mxu0
    %v558 = vadd.f32 %v510, %v557
    %v559 = vpop.f32.mrb[0].mxu0
    %560 = vmatprep.mubr.bf16.mxu0 0
    %561 = vmatmul.mubr.bf16.gmra.mrb[0].mxu0 %v386
    %v562 = vpop.f32.mrb[0].mxu0
    %v563 = vadd.f32 %v510, %v562
    %v564 = vpop.f32.mrb[0].mxu0
    %v565 = vpop.f32.mrb[0].mxu0
    %v566 = vadd.f32 %v510, %v565
    %v567 = vpop.f32.mrb[0].mxu0
    %568 = vmatprep.mubr.bf16.mxu0 0
    %569 = vmatmul.mubr.bf16.gmra.mrb[0].mxu0 %v387
    %v570 = vpop.f32.mrb[0].mxu0
    %v571 = vadd.f32 %v510, %v570
    %v572 = vpop.f32.mrb[0].mxu0
    %v573 = vpop.f32.mrb[0].mxu0
    %v574 = vadd.f32 %v510, %v573
    %v575 = vpop.f32.mrb[0].mxu0
    %576 = vmatprep.mubr.bf16.mxu0 0
    %577 = vmatmul.mubr.bf16.gmra.mrb[0].mxu0 %v388
    %v578 = vpop.f32.mrb[0].mxu0
    %v579 = vadd.f32 %v510, %v578
    %v580 = vpop.f32.mrb[0].mxu0
    %v581 = vpop.f32.mrb[0].mxu0
    %v582 = vadd.f32 %v510, %v581
    %v583 = vpop.f32.mrb[0].mxu0
    %584 = vmatprep.mubr.bf16.mxu0 0
    %585 = vmatmul.mubr.bf16.gmra.mrb[0].mxu0 %v389
    %v586 = vpop.f32.mrb[0].mxu0
    %v587 = vadd.f32 %v510, %v586
    %v588 = vpop.f32.mrb[0].mxu0
    %v589 = vpop.f32.mrb[0].mxu0
    %v590 = vadd.f32 %v510, %v589
    %v591 = vpop.f32.mrb[0].mxu0
    %592 = vmatprep.mubr.bf16.mxu0 0
    %593 = vmatmul.mubr.bf16.gmra.mrb[0].mxu0 %v390
    %v594 = vpop.f32.mrb[0].mxu0
    %v595 = vadd.f32 %v510, %v594
    %v596 = vpop.f32.mrb[0].mxu0
    %v597 = vpop.f32.mrb[0].mxu0
    %v598 = vadd.f32 %v510, %v597
    %v599 = vpop.f32.mrb[0].mxu0
    %600 = vmatprep.mubr.bf16.mxu0 0
    %601 = vmatmul.mubr.bf16.gmra.mrb[0].mxu0 %v391
    %v602 = vpop.f32.mrb[0].mxu0
    %v603 = vadd.f32 %v510, %v602
    %v604 = vpop.f32.mrb[0].mxu0
    %v605 = vpop.f32.mrb[0].mxu0
    %v606 = vadd.f32 %v510, %v605
    %v607 = vpop.f32.mrb[0].mxu0
    %608 = vdwg.mxu0
    %v609 = vpack.c.bf16 %v550, %v547
    %v610 = vpack.c.bf16 %v558, %v555
    %v611 = vpack.c.bf16 %v566, %v563
    %v612 = vpack.c.bf16 %v574, %v571
    %v613 = vpack.c.bf16 %v582, %v579
    %v614 = vpack.c.bf16 %v590, %v587
    %v615 = vpack.c.bf16 %v598, %v595
    %v616 = vpack.c.bf16 %v606, %v603
    %617 = vmatprep.subr.bf16.mxu0 0
    %618 = vmatpush1.bf16.msra.mxu0 %v609
    %619 = vmatprep.subr.bf16.mxu0 0
    %620 = vmatpush1.bf16.msra.mxu0 %v610
    %621 = vmatprep.subr.bf16.mxu0 0
    %622 = vmatpush1.bf16.msra.mxu0 %v611
    %623 = vmatprep.subr.bf16.mxu0 0
    %624 = vmatpush1.bf16.msra.mxu0 %v612
    %625 = vmatprep.subr.bf16.mxu0 0
    %626 = vmatpush1.bf16.msra.mxu0 %v613
    %627 = vmatprep.subr.bf16.mxu0 0
    %628 = vmatpush1.bf16.msra.mxu0 %v614
    %629 = vmatprep.subr.bf16.mxu0 0
    %630 = vmatpush1.bf16.msra.mxu0 %v615
    %631 = vmatprep.subr.bf16.mxu0 0
    %632 = vmatpush1.bf16.msra.mxu0 %v616
    %633 = vmatprep.subr.bf16.mxu0 0
    %634 = vmatpush1.bf16.msra.mxu0 0
    %635 = vmatprep.subr.bf16.mxu0 0
    %636 = vmatpush1.bf16.msra.mxu0 0
    %637 = vmatprep.subr.bf16.mxu0 0
    %638 = vmatpush1.bf16.msra.mxu0 0
    %639 = vmatprep.subr.bf16.mxu0 0
    %640 = vmatpush1.bf16.msra.mxu0 0
    %641 = vmatprep.subr.bf16.mxu0 0
    %642 = vmatpush1.bf16.msra.mxu0 0
    %643 = vmatprep.subr.bf16.mxu0 0
    %644 = vmatpush1.bf16.msra.mxu0 0
    %645 = vmatprep.subr.bf16.mxu0 0
    %646 = vmatpush1.bf16.msra.mxu0 0
    %647 = vmatprep.subr.bf16.mxu0 0
    %648 = vmatpush1.bf16.msra.mxu0 0
    %649 = vmatprep.mubr.bf16.mxu0 0
    %650 = vmatmul.mubr.bf16.gmra.mrb[0].mxu0 %v384
    %v651 = vpop.f32.mrb[0].mxu0
    %v652 = vadd.f32 0.0, %v651
    %v653 = vpop.f32.mrb[0].mxu0
    %v654 = vpop.f32.mrb[0].mxu0
    %v655 = vadd.f32 0.0, %v654
    %v656 = vpop.f32.mrb[0].mxu0
    %657 = vmatprep.mubr.bf16.mxu0 0
    %658 = vmatmul.mubr.bf16.gmra.mrb[0].mxu0 %v385
    %v659 = vpop.f32.mrb[0].mxu0
    %v660 = vadd.f32 0.0, %v659
    %v661 = vpop.f32.mrb[0].mxu0
    %v662 = vpop.f32.mrb[0].mxu0
    %v663 = vadd.f32 0.0, %v662
    %v664 = vpop.f32.mrb[0].mxu0
    %665 = vmatprep.mubr.bf16.mxu0 0
    %666 = vmatmul.mubr.bf16.gmra.mrb[0].mxu0 %v386
    %v667 = vpop.f32.mrb[0].mxu0
    %v668 = vadd.f32 0.0, %v667
    %v669 = vpop.f32.mrb[0].mxu0
    %v670 = vpop.f32.mrb[0].mxu0
    %v671 = vadd.f32 0.0, %v670
    %v672 = vpop.f32.mrb[0].mxu0
    %673 = vmatprep.mubr.bf16.mxu0 0
    %674 = vmatmul.mubr.bf16.gmra.mrb[0].mxu0 %v387
    %v675 = vpop.f32.mrb[0].mxu0
    %v676 = vadd.f32 0.0, %v675
    %v677 = vpop.f32.mrb[0].mxu0
    %v678 = vpop.f32.mrb[0].mxu0
    %v679 = vadd.f32 0.0, %v678
    %v680 = vpop.f32.mrb[0].mxu0
    %681 = vmatprep.mubr.bf16.mxu0 0
    %682 = vmatmul.mubr.bf16.gmra.mrb[0].mxu0 %v388
    %v683 = vpop.f32.mrb[0].mxu0
    %v684 = vadd.f32 0.0, %v683
    %v685 = vpop.f32.mrb[0].mxu0
    %v686 = vpop.f32.mrb[0].mxu0
    %v687 = vadd.f32 0.0, %v686
    %v688 = vpop.f32.mrb[0].mxu0
    %689 = vmatprep.mubr.bf16.mxu0 0
    %690 = vmatmul.mubr.bf16.gmra.mrb[0].mxu0 %v389
    %v691 = vpop.f32.mrb[0].mxu0
    %v692 = vadd.f32 0.0, %v691
    %v693 = vpop.f32.mrb[0].mxu0
    %v694 = vpop.f32.mrb[0].mxu0
    %v695 = vadd.f32 0.0, %v694
    %v696 = vpop.f32.mrb[0].mxu0
    %697 = vmatprep.mubr.bf16.mxu0 0
    %698 = vmatmul.mubr.bf16.gmra.mrb[0].mxu0 %v390
    %v699 = vpop.f32.mrb[0].mxu0
    %v700 = vadd.f32 0.0, %v699
    %v701 = vpop.f32.mrb[0].mxu0
    %v702 = vpop.f32.mrb[0].mxu0
    %v703 = vadd.f32 0.0, %v702
    %v704 = vpop.f32.mrb[0].mxu0
    %705 = vmatprep.mubr.bf16.mxu0 0
    %706 = vmatmul.mubr.bf16.gmra.mrb[0].mxu0 %v391
    %v707 = vpop.f32.mrb[0].mxu0
    %v708 = vadd.f32 0.0, %v707
    %v709 = vpop.f32.mrb[0].mxu0
    %v710 = vpop.f32.mrb[0].mxu0
    %v711 = vadd.f32 0.0, %v710
    %v712 = vpop.f32.mrb[0].mxu0
    %713 = vdwg.mxu0
    %v714 = vpack.c.bf16 %v655, %v652
    %v715 = vpack.c.bf16 %v663, %v660
    %v716 = vpack.c.bf16 %v671, %v668
    %v717 = vpack.c.bf16 %v679, %v676
    %v718 = vpack.c.bf16 %v687, %v684
    %v719 = vpack.c.bf16 %v695, %v692
    %v720 = vpack.c.bf16 %v703, %v700
    %v721 = vpack.c.bf16 %v711, %v708
    %v722 = vld [vmem:[#allocation10] sm:$0xf]
    %v723 = vld [vmem:[#allocation10 + $0x4] sm:$0xf]
    %v724 = vld [vmem:[#allocation10 + $0x8] sm:$0xf]
    %v725 = vld [vmem:[#allocation10 + $0xc] sm:$0xf]
    %v726 = vld [vmem:[#allocation10 + $0x10] sm:$0xf]
    %v727 = vld [vmem:[#allocation10 + $0x14] sm:$0xf]
    %v728 = vld [vmem:[#allocation10 + $0x18] sm:$0xf]
    %v729 = vld [vmem:[#allocation10 + $0x1c] sm:$0xf]
    %v730 = vld [vmem:[#allocation10 + $0x20] sm:$0xf]
    %v731 = vld [vmem:[#allocation10 + $0x24] sm:$0xf]
    %v732 = vld [vmem:[#allocation10 + $0x28] sm:$0xf]
    %v733 = vld [vmem:[#allocation10 + $0x2c] sm:$0xf]
    %v734 = vld [vmem:[#allocation10 + $0x30] sm:$0xf]
    %v735 = vld [vmem:[#allocation10 + $0x34] sm:$0xf]
    %v736 = vld [vmem:[#allocation10 + $0x38] sm:$0xf]
    %v737 = vld [vmem:[#allocation10 + $0x3c] sm:$0xf]
    %v738 = vld [vmem:[#allocation11] sm:$0x1]
    %v740 = vlaneseq
    %v741 = vshrl.u32 %v740, 7
    %v742 = vsub.s32 0, %v741
    %v743 = vrot.slane %v738, %v742
    %v761 = vunpack.c.l.b16 %v722
    %v762 = vunpack.c.l.b16 %v723
    %v763 = vunpack.c.l.b16 %v724
    %v764 = vunpack.c.l.b16 %v725
    %v765 = vunpack.c.l.b16 %v726
    %v766 = vunpack.c.l.b16 %v727
    %v767 = vunpack.c.l.b16 %v728
    %v768 = vunpack.c.l.b16 %v729
    %v769 = vunpack.c.l.b16 %v730
    %v770 = vunpack.c.l.b16 %v731
    %v771 = vunpack.c.l.b16 %v732
    %v772 = vunpack.c.l.b16 %v733
    %v773 = vunpack.c.l.b16 %v734
    %v774 = vunpack.c.l.b16 %v735
    %v775 = vunpack.c.l.b16 %v736
    %v776 = vunpack.c.l.b16 %v737
    %v777 = vpack.c.b16 %v762, %v761
    %v778 = vpack.c.b16 %v764, %v763
    %v779 = vpack.c.b16 %v766, %v765
    %v780 = vpack.c.b16 %v768, %v767
    %v781 = vpack.c.b16 %v770, %v769
    %v782 = vpack.c.b16 %v772, %v771
    %v783 = vpack.c.b16 %v774, %v773
    %v784 = vpack.c.b16 %v776, %v775
    %793 = vmatprep.subr.bf16.mxu0 0
    %794 = vmatpush1.bf16.msra.mxu0 %v777
    %795 = vmatprep.subr.bf16.mxu0 0
    %796 = vmatpush1.bf16.msra.mxu0 %v778
    %797 = vmatprep.subr.bf16.mxu0 0
    %798 = vmatpush1.bf16.msra.mxu0 %v779
    %799 = vmatprep.subr.bf16.mxu0 0
    %800 = vmatpush1.bf16.msra.mxu0 %v780
    %801 = vmatprep.subr.bf16.mxu0 0
    %802 = vmatpush1.bf16.msra.mxu0 %v781
    %803 = vmatprep.subr.bf16.mxu0 0
    %804 = vmatpush1.bf16.msra.mxu0 %v782
    %805 = vmatprep.subr.bf16.mxu0 0
    %806 = vmatpush1.bf16.msra.mxu0 %v783
    %807 = vmatprep.subr.bf16.mxu0 0
    %808 = vmatpush1.bf16.msra.mxu0 %v784
    %809 = vmatprep.subr.bf16.mxu0 0
    %810 = vmatpush1.bf16.msra.mxu0 0
    %811 = vmatprep.subr.bf16.mxu0 0
    %812 = vmatpush1.bf16.msra.mxu0 0
    %813 = vmatprep.subr.bf16.mxu0 0
    %814 = vmatpush1.bf16.msra.mxu0 0
    %815 = vmatprep.subr.bf16.mxu0 0
    %816 = vmatpush1.bf16.msra.mxu0 0
    %817 = vmatprep.subr.bf16.mxu0 0
    %818 = vmatpush1.bf16.msra.mxu0 0
    %819 = vmatprep.subr.bf16.mxu0 0
    %820 = vmatpush1.bf16.msra.mxu0 0
    %821 = vmatprep.subr.bf16.mxu0 0
    %822 = vmatpush1.bf16.msra.mxu0 0
    %823 = vmatprep.subr.bf16.mxu0 0
    %824 = vmatpush1.bf16.msra.mxu0 0
    %825 = vmatprep.mubr.bf16.mxu0 0
    %826 = vmatmul.mubr.bf16.gmra.mrb[0].mxu0 %v714
    %v827 = vpop.f32.mrb[0].mxu0
    %v828 = vadd.f32 %v743, %v827
    %v829 = vpop.f32.mrb[0].mxu0
    %v830 = vpop.f32.mrb[0].mxu0
    %v831 = vadd.f32 %v743, %v830
    %v832 = vpop.f32.mrb[0].mxu0
    %833 = vmatprep.mubr.bf16.mxu0 0
    %834 = vmatmul.mubr.bf16.gmra.mrb[0].mxu0 %v715
    %v835 = vpop.f32.mrb[0].mxu0
    %v836 = vadd.f32 %v743, %v835
    %v837 = vpop.f32.mrb[0].mxu0
    %v838 = vpop.f32.mrb[0].mxu0
    %v839 = vadd.f32 %v743, %v838
    %v840 = vpop.f32.mrb[0].mxu0
    %841 = vmatprep.mubr.bf16.mxu0 0
    %842 = vmatmul.mubr.bf16.gmra.mrb[0].mxu0 %v716
    %v843 = vpop.f32.mrb[0].mxu0
    %v844 = vadd.f32 %v743, %v843
    %v845 = vpop.f32.mrb[0].mxu0
    %v846 = vpop.f32.mrb[0].mxu0
    %v847 = vadd.f32 %v743, %v846
    %v848 = vpop.f32.mrb[0].mxu0
    %849 = vmatprep.mubr.bf16.mxu0 0
    %850 = vmatmul.mubr.bf16.gmra.mrb[0].mxu0 %v717
    %v851 = vpop.f32.mrb[0].mxu0
    %v852 = vadd.f32 %v743, %v851
    %v853 = vpop.f32.mrb[0].mxu0
    %v854 = vpop.f32.mrb[0].mxu0
    %v855 = vadd.f32 %v743, %v854
    %v856 = vpop.f32.mrb[0].mxu0
    %857 = vmatprep.mubr.bf16.mxu0 0
    %858 = vmatmul.mubr.bf16.gmra.mrb[0].mxu0 %v718
    %v859 = vpop.f32.mrb[0].mxu0
    %v860 = vadd.f32 %v743, %v859
    %v861 = vpop.f32.mrb[0].mxu0
    %v862 = vpop.f32.mrb[0].mxu0
    %v863 = vadd.f32 %v743, %v862
    %v864 = vpop.f32.mrb[0].mxu0
    %865 = vmatprep.mubr.bf16.mxu0 0
    %866 = vmatmul.mubr.bf16.gmra.mrb[0].mxu0 %v719
    %v867 = vpop.f32.mrb[0].mxu0
    %v868 = vadd.f32 %v743, %v867
    %v869 = vpop.f32.mrb[0].mxu0
    %v870 = vpop.f32.mrb[0].mxu0
    %v871 = vadd.f32 %v743, %v870
    %v872 = vpop.f32.mrb[0].mxu0
    %873 = vmatprep.mubr.bf16.mxu0 0
    %874 = vmatmul.mubr.bf16.gmra.mrb[0].mxu0 %v720
    %v875 = vpop.f32.mrb[0].mxu0
    %v876 = vadd.f32 %v743, %v875
    %v877 = vpop.f32.mrb[0].mxu0
    %v878 = vpop.f32.mrb[0].mxu0
    %v879 = vadd.f32 %v743, %v878
    %v880 = vpop.f32.mrb[0].mxu0
    %881 = vmatprep.mubr.bf16.mxu0 0
    %882 = vmatmul.mubr.bf16.gmra.mrb[0].mxu0 %v721
    %v883 = vpop.f32.mrb[0].mxu0
    %v884 = vadd.f32 %v743, %v883
    %v885 = vpop.f32.mrb[0].mxu0
    %v886 = vpop.f32.mrb[0].mxu0
    %v887 = vadd.f32 %v743, %v886
    %v888 = vpop.f32.mrb[0].mxu0
    %889 = vdwg.mxu0
    %890 = vst [vmem:[#allocation13] sm:$0xff] %v828
    %891 = vst [vmem:[#allocation13 + $0x8] sm:$0xff] %v831
    %892 = vst [vmem:[#allocation13 + $0x10] sm:$0xff] %v836
    %893 = vst [vmem:[#allocation13 + $0x18] sm:$0xff] %v839
    %894 = vst [vmem:[#allocation13 + $0x20] sm:$0xff] %v844
    %895 = vst [vmem:[#allocation13 + $0x28] sm:$0xff] %v847
    %896 = vst [vmem:[#allocation13 + $0x30] sm:$0xff] %v852
    %897 = vst [vmem:[#allocation13 + $0x38] sm:$0xff] %v855
    %898 = vst [vmem:[#allocation13 + $0x40] sm:$0xff] %v860
    %899 = vst [vmem:[#allocation13 + $0x48] sm:$0xff] %v863
    %900 = vst [vmem:[#allocation13 + $0x50] sm:$0xff] %v868
    %901 = vst [vmem:[#allocation13 + $0x58] sm:$0xff] %v871
    %902 = vst [vmem:[#allocation13 + $0x60] sm:$0xff] %v876
    %903 = vst [vmem:[#allocation13 + $0x68] sm:$0xff] %v879
    %904 = vst [vmem:[#allocation13 + $0x70] sm:$0xff] %v884
    %905 = vst [vmem:[#allocation13 + $0x78] sm:$0xff] %v887
    // Predicated region
    $region50: #{sgc_forward.1} parent=1 // pred_check
      _
    $region51: #{sgc_forward.1} parent=1 // pred_check_branch
      %907 = sbr.rel (0) target = $region53
    $region52: #{sgc_forward.1} parent=1 // pred_region
      %s909 = ssub.s32 2048, 2048
      %910 = vsyncadd [#allocation4], %s909
      %s911 = sshll.u32 [#allocation13], 4
      %s912 = int_to_ptr.vmem [resolvable:$true] %s911
      %917 = dma.vmem_to_hbm [thread:$0]  %s912, 2048, %s6, [#allocation4], 128, 128, 8
    $region53: #{sgc_forward.1} parent=1 // pred_fallthru
      _
    // Predicated region
    $region54: #{sgc_forward.1} parent=1 // pred_check
      _
    $region55: #{sgc_forward.1} parent=1 // pred_check_branch
      %919 = sbr.rel (0) target = $region57
    $region56: #{sgc_forward.1} parent=1 // pred_region
      %920 = dma.done [#allocation4], 2048
    $region57: #{sgc_forward.1} parent=1 // pred_fallthru
      _
    %921 = vsyncpa [#allocation3], 1
    %922 = vsyncpa [#allocation6], 1
    %923 = vsyncpa [#allocation9], 1
    %924 = vsyncpa [#allocation12], 1
    %925 = vsyncpa [#allocation4], 1

</llo_original>
